<compile_context>
chip_gen: v5e
topology: v5e:2x2
jax: 0.10.0
libtpu: 0.0.40
codegen_flags: <defaults>
</compile_context>

<pallas_src>
import jax
import jax.numpy as jnp
from jax import lax
from jax.experimental import pallas as pl
from jax.experimental.pallas import tpu as pltpu

VOCAB = 10
HIDDEN = 10
V_PAD = 128          # padded vocab (one-hot / contraction axis, lane-aligned)
H_PAD = 16           # padded hidden (sublane axis; multiple of 8 suffices for f32)
MAX_TOKEN_TILE = 4096


def dummy_model_kernel(ids_ref, tbl_t_ref, out_ref):
    # ids_ref:   [1, 1, TN] int32   -- token ids, lane-dense
    # tbl_t_ref: [H_PAD, V_PAD] f32 -- folded (emb->linear->lm_head) table, transposed
    # out_ref:   [H_PAD, TN]   f32  -- hidden on sublanes, tokens on lanes
    ids = ids_ref[0]                                               # [1, TN]
    rows = lax.broadcasted_iota(
        jnp.int32, (tbl_t_ref.shape[1], ids.shape[1]), 0)          # [V_PAD, TN]
    onehot = (ids == rows).astype(jnp.float32)                     # [V_PAD, TN]
    # out[h, t] = sum_v T^T[h, v] * onehot[v, t] -- one small MXU matmul per tile.
    # HIGHEST precision: each output element is exactly one table entry, and a
    # single bf16 MXU pass would round it to ~4e-3 relative error.
    out_ref[...] = jnp.dot(tbl_t_ref[...], onehot,
                           preferred_element_type=jnp.float32,
                           precision=lax.Precision.HIGHEST)


def _choose_token_tile(n):
    """Lane-aligned tile size: >=2 tiles when possible (v7x megacore), <=4096."""
    n128 = ((n + 127) // 128) * 128
    if n128 <= 128:
        return 128
    half = ((n128 // 2 + 127) // 128) * 128
    return min(MAX_TOKEN_TILE, half)


@jax.jit
def dummy_model_forward(input_ids, emb_w, lin_w, lin_b, head_w, head_b):
    """input_ids: int32 [B, S] -> float32 [B, S, HIDDEN]."""
    B, S = input_ids.shape
    n = B * S

    # The model is affine in the one-hot of the token id, so fold both Linears
    # into the embedding table once: T = (E @ W1^T + b1) @ W2^T + b2, [V, H].
    # Zero-pad + pre-transpose to [H_PAD, V_PAD]; done inside the same jit so
    # XLA fuses these tiny HLOs with the pallas_call.
    tbl = (jnp.dot(emb_w, lin_w.T, precision=lax.Precision.HIGHEST) + lin_b)
    tbl = (jnp.dot(tbl, head_w.T, precision=lax.Precision.HIGHEST) + head_b)
    tbl_t = jnp.zeros((H_PAD, V_PAD), jnp.float32).at[:HIDDEN, :VOCAB].set(tbl.T)

    # Tokens, padded to a whole number of lane-dense tiles.
    token_tile = _choose_token_tile(n)
    num_tiles = pl.cdiv(n, token_tile)
    n_pad = num_tiles * token_tile
    ids = jnp.zeros((n_pad,), jnp.int32).at[:n].set(
        input_ids.reshape(-1).astype(jnp.int32))
    ids = ids.reshape(num_tiles, 1, token_tile)

    out = pl.pallas_call(
        dummy_model_kernel,
        out_shape=jax.ShapeDtypeStruct((H_PAD, n_pad), jnp.float32),
        grid=(num_tiles,),
        in_specs=[
            pl.BlockSpec((1, 1, token_tile), lambda i: (i, 0, 0)),   # ids tile
            pl.BlockSpec(memory_space=pltpu.MemorySpace.VMEM),       # resident folded table
        ],
        out_specs=pl.BlockSpec((H_PAD, token_tile), lambda i: (0, i)),
        compiler_params=pltpu.CompilerParams(
            dimension_semantics=("parallel",)),
    )(ids, tbl_t)

    # [H_PAD, n_pad] -> [n, HIDDEN] -> [B, S, HIDDEN]. With H_PAD=16 this
    # slice+transpose is ~64 B/token and fuses inside the jit.
    return out[:HIDDEN, :n].T.reshape(B, S, HIDDEN)


def _reference(input_ids, emb_w, lin_w, lin_b, head_w, head_b):
    x = emb_w[input_ids]          # embedding gather
    x = x @ lin_w.T + lin_b       # linear
    x = x @ head_w.T + head_b     # lm_head
    return x


if __name__ == "__main__":
    # Full-f32 matmuls everywhere (fold + reference) so the 1e-4 check is
    # meaningful on v5e/v6e where the default matmul path is a bf16 MXU pass.
    jax.config.update("jax_default_matmul_precision", "highest")

    key = jax.random.PRNGKey(0)
    k_ids, k_emb, k_w1, k_b1, k_w2, k_b2 = jax.random.split(key, 6)

    B, S = 2, 8
    input_ids = jax.random.randint(k_ids, (B, S), 0, VOCAB, dtype=jnp.int32)

    # Deterministic synthetic parameters (no checkpoint load).
    emb_w = jax.random.normal(k_emb, (VOCAB, HIDDEN), jnp.float32)
    lin_w = jax.random.normal(k_w1, (HIDDEN, HIDDEN), jnp.float32) * 0.1
    lin_b = jax.random.normal(k_b1, (HIDDEN,), jnp.float32) * 0.1
    head_w = jax.random.normal(k_w2, (HIDDEN, HIDDEN), jnp.float32) * 0.1
    head_b = jax.random.normal(k_b2, (HIDDEN,), jnp.float32) * 0.1

    out = dummy_model_forward(input_ids, emb_w, lin_w, lin_b, head_w, head_b)
    out = jax.block_until_ready(out)

    ref = _reference(input_ids, emb_w, lin_w, lin_b, head_w, head_b)
    assert out.shape == (B, S, HIDDEN), out.shape
    assert jnp.allclose(out, ref, atol=1e-4, rtol=1e-4), "mismatch vs reference"

    print("KERNEL_OK")
</pallas_src>

<mosaic_0001>
module attributes {stable_mosaic.version = 11 : i64} {
  func.func @dummy_model_kernel(%arg0: i32, %arg1: memref<1x1x128xi32, #tpu.memory_space<vmem>>, %arg2: memref<16x128xf32, #tpu.memory_space<vmem>>, %arg3: memref<16x128xf32, #tpu.memory_space<vmem>>) attributes {dimension_semantics = [#tpu.dimension_semantics<parallel>], iteration_bounds = array<i64: 1>, scalar_prefetch = 0 : i64, scratch_operands = 0 : i64, tpu.core_type = #tpu.core_type<tc>, window_params = [{transform_indices = @transform_0, window_bounds = array<i64: 1, 1, 128>}, {pipeline_mode = #tpu.pipeline_mode<synchronous>, transform_indices = @transform_1, window_bounds = array<i64: 16, 128>}, {transform_indices = @transform_2, window_bounds = array<i64: 16, 128>}]} {
    %c0 = arith.constant 0 : index
    %c0_0 = arith.constant 0 : index
    %c0_1 = arith.constant 0 : index
    %0 = vector.load %arg1[%c0, %c0_0, %c0_1] : memref<1x1x128xi32, #tpu.memory_space<vmem>>, vector<1x1x128xi32>
    %1 = vector.shape_cast %0 : vector<1x1x128xi32> to vector<1x128xi32>
    %2 = tpu.iota {dimensions = array<i32: 0>} : vector<128x128xi32>
    %3 = vector.broadcast %1 : vector<1x128xi32> to vector<128x128xi32>
    %4 = arith.cmpi eq, %3, %2 : vector<128x128xi32>
    %5 = arith.extui %4 : vector<128x128xi1> to vector<128x128xi32>
    %6 = arith.sitofp %5 : vector<128x128xi32> to vector<128x128xf32>
    %c0_2 = arith.constant 0 : index
    %c0_3 = arith.constant 0 : index
    %7 = vector.load %arg2[%c0_2, %c0_3] : memref<16x128xf32, #tpu.memory_space<vmem>>, vector<16x128xf32>
    %cst = arith.constant dense<0.000000e+00> : vector<16x128xf32>
    %8 = tpu.matmul %7, %6, %cst {dimension_numbers = #tpu.dot_dimension_numbers<[1], [0], [0], [1], [0, 0, 1, 1], [], []>, precision = #tpu.contract_precision<fp32>} : vector<16x128xf32>, vector<128x128xf32>, vector<16x128xf32> -> vector<16x128xf32>
    %c0_4 = arith.constant 0 : index
    %c0_5 = arith.constant 0 : index
    %9 = vector.load %arg3[%c0_4, %c0_5] : memref<16x128xf32, #tpu.memory_space<vmem>>, vector<16x128xf32>
    tpu.vector_store %arg3[%c0_4, %c0_5], %8 {strides = array<i32>} : memref<16x128xf32, #tpu.memory_space<vmem>>, vector<16x128xf32>,
    return
  }
  func.func @transform_0(%arg0: i32) -> (i32, i32, i32) {
    %c0_i32 = arith.constant 0 : i32
    %c0_i32_0 = arith.constant 0 : i32
    %c0_i32_1 = arith.constant 0 : i32
    return %arg0, %c0_i32, %c0_i32_0 : i32, i32, i32
  }
  func.func @transform_1(%arg0: i32) -> (i32, i32) {
    %c0_i32 = arith.constant 0 : i32
    %c0_i32_0 = arith.constant 0 : i32
    %c0_i32_1 = arith.constant 0 : i32
    return %c0_i32, %c0_i32_0 : i32, i32
  }
  func.func @transform_2(%arg0: i32) -> (i32, i32) {
    %c0_i32 = arith.constant 0 : i32
    %c0_i32_0 = arith.constant 0 : i32
    return %c0_i32, %arg0 : i32, i32
  }
}

</mosaic_0001>

<llo_original>
// kernel: dummy_model_forward.1
$region0: #{dummy_model_forward.1}
  #allocation0 [shape = 'u32[]', space=smem, size = 0x4, offset = 0x4, fixed_abs, tag = 'smem constant byte address 0x4 - core index']
  #allocation1 [shape = 'u32[72,128]{1,0:T(1,128)}', space=vmem, size = 0x9000, scoped, tag = 'internal scratch']
  %s0 = inlined_call_operand.vmem [shape: s32[1,1,128], index: 0, kind: input, shape index: {}]
  %s1 = inlined_call_operand.vmem [shape: f32[16,128], index: 1, kind: input, shape index: {}]
  %s2 = inlined_call_operand.vmem [shape: f32[16,128], index: 2, kind: output, shape index: {}]
  %s3 = sld [smem:[#allocation0]]
  $region18: #{dummy_model_forward.1} parent=0
    _
  %s5 = ssub.s32 1, %s3
  %s6 = scalar_select 0, %s5, %s3
  // Predicated region
  $region2: #{dummy_model_forward.1} parent=0 // pred_check
    _
  $region3: #{dummy_model_forward.1} parent=0 // pred_check_branch
    %8 = sbr.rel (0) target = $region5
  $region4: #{dummy_model_forward.1} parent=0 // pred_region
    _
  $region5: #{dummy_model_forward.1} parent=0 // pred_fallthru
    _
  // Predicated region
  $region6: #{dummy_model_forward.1} parent=0 // pred_check
    _
  $region7: #{dummy_model_forward.1} parent=0 // pred_check_branch
    %10 = sbr.rel (0) target = $region9
  $region8: #{dummy_model_forward.1} parent=0 // pred_region
    _
  $region9: #{dummy_model_forward.1} parent=0 // pred_fallthru
    _
  %v11 = vld [vmem:[%s0] sm:$0x1]
  %v12 = vlaneseq
  %v13 = vshrl.u32 %v12, 7
  %v14 = vadd.s32 %v13, 8
  %v15 = vadd.s32 %v13, 16
  %v16 = vadd.s32 %v13, 24
  %v17 = vadd.s32 %v13, 32
  %v18 = vadd.s32 %v13, 40
  %v19 = vadd.s32 %v13, 48
  %v20 = vadd.s32 %v13, 56
  %v21 = vadd.s32 %v13, 64
  %v22 = vadd.s32 %v13, 72
  %v23 = vadd.s32 %v13, 80
  %v24 = vadd.s32 %v13, 88
  %v25 = vadd.s32 %v13, 96
  %v26 = vadd.s32 %v13, 104
  %v27 = vadd.s32 %v13, 112
  %v28 = vadd.s32 %v13, 120
  %v29 = vperm.slane %v11, 0
  %vm30 = vcmp.eq.s32.totalorder %v29, %v13
  %vm31 = vcmp.eq.s32.totalorder %v29, %v14
  %vm32 = vcmp.eq.s32.totalorder %v29, %v15
  %vm33 = vcmp.eq.s32.totalorder %v29, %v16
  %vm34 = vcmp.eq.s32.totalorder %v29, %v17
  %vm35 = vcmp.eq.s32.totalorder %v29, %v18
  %vm36 = vcmp.eq.s32.totalorder %v29, %v19
  %vm37 = vcmp.eq.s32.totalorder %v29, %v20
  %vm38 = vcmp.eq.s32.totalorder %v29, %v21
  %vm39 = vcmp.eq.s32.totalorder %v29, %v22
  %vm40 = vcmp.eq.s32.totalorder %v29, %v23
  %vm41 = vcmp.eq.s32.totalorder %v29, %v24
  %vm42 = vcmp.eq.s32.totalorder %v29, %v25
  %vm43 = vcmp.eq.s32.totalorder %v29, %v26
  %vm44 = vcmp.eq.s32.totalorder %v29, %v27
  %vm45 = vcmp.eq.s32.totalorder %v29, %v28
  %v46 = vsel %vm30, 1, 0
  %v47 = vsel %vm31, 1, 0
  %v48 = vsel %vm32, 1, 0
  %v49 = vsel %vm33, 1, 0
  %v50 = vsel %vm34, 1, 0
  %v51 = vsel %vm35, 1, 0
  %v52 = vsel %vm36, 1, 0
  %v53 = vsel %vm37, 1, 0
  %v54 = vsel %vm38, 1, 0
  %v55 = vsel %vm39, 1, 0
  %v56 = vsel %vm40, 1, 0
  %v57 = vsel %vm41, 1, 0
  %v58 = vsel %vm42, 1, 0
  %v59 = vsel %vm43, 1, 0
  %v60 = vsel %vm44, 1, 0
  %v61 = vsel %vm45, 1, 0
  %v62 = vcvt.s32.f32 %v46
  %v63 = vcvt.s32.f32 %v47
  %v64 = vcvt.s32.f32 %v48
  %v65 = vcvt.s32.f32 %v49
  %v66 = vcvt.s32.f32 %v50
  %v67 = vcvt.s32.f32 %v51
  %v68 = vcvt.s32.f32 %v52
  %v69 = vcvt.s32.f32 %v53
  %v70 = vcvt.s32.f32 %v54
  %v71 = vcvt.s32.f32 %v55
  %v72 = vcvt.s32.f32 %v56
  %v73 = vcvt.s32.f32 %v57
  %v74 = vcvt.s32.f32 %v58
  %v75 = vcvt.s32.f32 %v59
  %v76 = vcvt.s32.f32 %v60
  %v77 = vcvt.s32.f32 %v61
  %v78 = vld [vmem:[%s1] sm:$0xff]
  %v79 = vld [vmem:[%s1 + $0x8] sm:$0xff]
  %v80 = vand.u32 %v77, 4294901760
  %81 = vmatpush.msra.mxu0 %v80
  %v82 = vand.u32 %v76, 4294901760
  %83 = vmatpush.msra.mxu0 %v82
  %v84 = vand.u32 %v75, 4294901760
  %85 = vmatpush.msra.mxu0 %v84
  %v86 = vand.u32 %v74, 4294901760
  %87 = vmatpush.msra.mxu0 %v86
  %v88 = vand.u32 %v73, 4294901760
  %89 = vmatpush.msra.mxu0 %v88
  %v90 = vand.u32 %v72, 4294901760
  %91 = vmatpush.msra.mxu0 %v90
  %v92 = vand.u32 %v71, 4294901760
  %93 = vmatpush.msra.mxu0 %v92
  %v94 = vand.u32 %v70, 4294901760
  %95 = vmatpush.msra.mxu0 %v94
  %v96 = vand.u32 %v69, 4294901760
  %97 = vmatpush.msra.mxu0 %v96
  %v98 = vand.u32 %v68, 4294901760
  %99 = vmatpush.msra.mxu0 %v98
  %v100 = vand.u32 %v67, 4294901760
  %101 = vmatpush.msra.mxu0 %v100
  %v102 = vand.u32 %v66, 4294901760
  %103 = vmatpush.msra.mxu0 %v102
  %v104 = vand.u32 %v65, 4294901760
  %105 = vmatpush.msra.mxu0 %v104
  %v106 = vand.u32 %v64, 4294901760
  %107 = vmatpush.msra.mxu0 %v106
  %v108 = vand.u32 %v63, 4294901760
  %109 = vmatpush.msra.mxu0 %v108
  %v110 = vand.u32 %v62, 4294901760
  %111 = vmatpush.msra.mxu0 %v110
  %v112 = vand.u32 %v78, 4294901760
  %v113 = vsub.f32 %v78, %v112
  %v114 = vand.u32 %v113, 4294901760
  %v115 = vsub.f32 %v113, %v114
  %v116 = vand.u32 %v115, 4294901760
  %117 = vmatmul.f32.gmra.mxu0 %v116
  %v118 = vpop.f32.mrf.mxu0
  %v119 = vadd.f32 0.0, %v118
  %v120 = vand.u32 %v79, 4294901760
  %v121 = vsub.f32 %v79, %v120
  %v122 = vand.u32 %v121, 4294901760
  %v123 = vsub.f32 %v121, %v122
  %v124 = vand.u32 %v123, 4294901760
  %125 = vmatmul.f32.gmra.mxu0 %v124
  %v126 = vpop.f32.mrf.mxu0
  %v127 = vadd.f32 0.0, %v126
  %128 = vdwg.mxu0
  %v129 = vand.u32 %v77, 4294901760
  %v130 = vsub.f32 %v77, %v129
  %v131 = vand.u32 %v130, 4294901760
  %v132 = vsub.f32 %v130, %v131
  %v133 = vand.u32 %v132, 4294901760
  %134 = vmatpush.msra.mxu0 %v133
  %v135 = vand.u32 %v76, 4294901760
  %v136 = vsub.f32 %v76, %v135
  %v137 = vand.u32 %v136, 4294901760
  %v138 = vsub.f32 %v136, %v137
  %v139 = vand.u32 %v138, 4294901760
  %140 = vmatpush.msra.mxu0 %v139
  %v141 = vand.u32 %v75, 4294901760
  %v142 = vsub.f32 %v75, %v141
  %v143 = vand.u32 %v142, 4294901760
  %v144 = vsub.f32 %v142, %v143
  %v145 = vand.u32 %v144, 4294901760
  %146 = vmatpush.msra.mxu0 %v145
  %v147 = vand.u32 %v74, 4294901760
  %v148 = vsub.f32 %v74, %v147
  %v149 = vand.u32 %v148, 4294901760
  %v150 = vsub.f32 %v148, %v149
  %v151 = vand.u32 %v150, 4294901760
  %152 = vmatpush.msra.mxu0 %v151
  %v153 = vand.u32 %v73, 4294901760
  %v154 = vsub.f32 %v73, %v153
  %v155 = vand.u32 %v154, 4294901760
  %v156 = vsub.f32 %v154, %v155
  %v157 = vand.u32 %v156, 4294901760
  %158 = vmatpush.msra.mxu0 %v157
  %v159 = vand.u32 %v72, 4294901760
  %v160 = vsub.f32 %v72, %v159
  %v161 = vand.u32 %v160, 4294901760
  %v162 = vsub.f32 %v160, %v161
  %v163 = vand.u32 %v162, 4294901760
  %164 = vmatpush.msra.mxu0 %v163
  %v165 = vand.u32 %v71, 4294901760
  %v166 = vsub.f32 %v71, %v165
  %v167 = vand.u32 %v166, 4294901760
  %v168 = vsub.f32 %v166, %v167
  %v169 = vand.u32 %v168, 4294901760
  %170 = vmatpush.msra.mxu0 %v169
  %v171 = vand.u32 %v70, 4294901760
  %v172 = vsub.f32 %v70, %v171
  %v173 = vand.u32 %v172, 4294901760
  %v174 = vsub.f32 %v172, %v173
  %v175 = vand.u32 %v174, 4294901760
  %176 = vmatpush.msra.mxu0 %v175
  %v177 = vand.u32 %v69, 4294901760
  %v178 = vsub.f32 %v69, %v177
  %v179 = vand.u32 %v178, 4294901760
  %v180 = vsub.f32 %v178, %v179
  %v181 = vand.u32 %v180, 4294901760
  %182 = vmatpush.msra.mxu0 %v181
  %v183 = vand.u32 %v68, 4294901760
  %v184 = vsub.f32 %v68, %v183
  %v185 = vand.u32 %v184, 4294901760
  %v186 = vsub.f32 %v184, %v185
  %v187 = vand.u32 %v186, 4294901760
  %188 = vmatpush.msra.mxu0 %v187
  %v189 = vand.u32 %v67, 4294901760
  %v190 = vsub.f32 %v67, %v189
  %v191 = vand.u32 %v190, 4294901760
  %v192 = vsub.f32 %v190, %v191
  %v193 = vand.u32 %v192, 4294901760
  %194 = vmatpush.msra.mxu0 %v193
  %v195 = vand.u32 %v66, 4294901760
  %v196 = vsub.f32 %v66, %v195
  %v197 = vand.u32 %v196, 4294901760
  %v198 = vsub.f32 %v196, %v197
  %v199 = vand.u32 %v198, 4294901760
  %200 = vmatpush.msra.mxu0 %v199
  %v201 = vand.u32 %v65, 4294901760
  %v202 = vsub.f32 %v65, %v201
  %v203 = vand.u32 %v202, 4294901760
  %v204 = vsub.f32 %v202, %v203
  %v205 = vand.u32 %v204, 4294901760
  %206 = vmatpush.msra.mxu0 %v205
  %v207 = vand.u32 %v64, 4294901760
  %v208 = vsub.f32 %v64, %v207
  %v209 = vand.u32 %v208, 4294901760
  %v210 = vsub.f32 %v208, %v209
  %v211 = vand.u32 %v210, 4294901760
  %212 = vmatpush.msra.mxu0 %v211
  %v213 = vand.u32 %v63, 4294901760
  %v214 = vsub.f32 %v63, %v213
  %v215 = vand.u32 %v214, 4294901760
  %v216 = vsub.f32 %v214, %v215
  %v217 = vand.u32 %v216, 4294901760
  %218 = vmatpush.msra.mxu0 %v217
  %v219 = vand.u32 %v62, 4294901760
  %v220 = vsub.f32 %v62, %v219
  %v221 = vand.u32 %v220, 4294901760
  %v222 = vsub.f32 %v220, %v221
  %v223 = vand.u32 %v222, 4294901760
  %224 = vmatpush.msra.mxu0 %v223
  %v225 = vand.u32 %v78, 4294901760
  %226 = vmatmul.f32.gmra.mxu0 %v225
  %v227 = vpop.f32.mrf.mxu0
  %v228 = vadd.f32 %v119, %v227
  %v229 = vand.u32 %v79, 4294901760
  %230 = vmatmul.f32.gmra.mxu0 %v229
  %v231 = vpop.f32.mrf.mxu0
  %v232 = vadd.f32 %v127, %v231
  %233 = vdwg.mxu0
  %v234 = vand.u32 %v77, 4294901760
  %v235 = vsub.f32 %v77, %v234
  %236 = vmatpush.msra.mxu0 %v235
  %v237 = vand.u32 %v76, 4294901760
  %v238 = vsub.f32 %v76, %v237
  %239 = vmatpush.msra.mxu0 %v238
  %v240 = vand.u32 %v75, 4294901760
  %v241 = vsub.f32 %v75, %v240
  %242 = vmatpush.msra.mxu0 %v241
  %v243 = vand.u32 %v74, 4294901760
  %v244 = vsub.f32 %v74, %v243
  %245 = vmatpush.msra.mxu0 %v244
  %v246 = vand.u32 %v73, 4294901760
  %v247 = vsub.f32 %v73, %v246
  %248 = vmatpush.msra.mxu0 %v247
  %v249 = vand.u32 %v72, 4294901760
  %v250 = vsub.f32 %v72, %v249
  %251 = vmatpush.msra.mxu0 %v250
  %v252 = vand.u32 %v71, 4294901760
  %v253 = vsub.f32 %v71, %v252
  %254 = vmatpush.msra.mxu0 %v253
  %v255 = vand.u32 %v70, 4294901760
  %v256 = vsub.f32 %v70, %v255
  %257 = vmatpush.msra.mxu0 %v256
  %v258 = vand.u32 %v69, 4294901760
  %v259 = vsub.f32 %v69, %v258
  %260 = vmatpush.msra.mxu0 %v259
  %v261 = vand.u32 %v68, 4294901760
  %v262 = vsub.f32 %v68, %v261
  %263 = vmatpush.msra.mxu0 %v262
  %v264 = vand.u32 %v67, 4294901760
  %v265 = vsub.f32 %v67, %v264
  %266 = vmatpush.msra.mxu0 %v265
  %v267 = vand.u32 %v66, 4294901760
  %v268 = vsub.f32 %v66, %v267
  %269 = vmatpush.msra.mxu0 %v268
  %v270 = vand.u32 %v65, 4294901760
  %v271 = vsub.f32 %v65, %v270
  %272 = vmatpush.msra.mxu0 %v271
  %v273 = vand.u32 %v64, 4294901760
  %v274 = vsub.f32 %v64, %v273
  %275 = vmatpush.msra.mxu0 %v274
  %v276 = vand.u32 %v63, 4294901760
  %v277 = vsub.f32 %v63, %v276
  %278 = vmatpush.msra.mxu0 %v277
  %v279 = vand.u32 %v62, 4294901760
  %v280 = vsub.f32 %v62, %v279
  %281 = vmatpush.msra.mxu0 %v280
  %v282 = vand.u32 %v78, 4294901760
  %v283 = vsub.f32 %v78, %v282
  %284 = vmatmul.f32.gmra.mxu0 %v283
  %v285 = vpop.f32.mrf.mxu0
  %v286 = vadd.f32 %v228, %v285
  %v287 = vand.u32 %v79, 4294901760
  %v288 = vsub.f32 %v79, %v287
  %289 = vmatmul.f32.gmra.mxu0 %v288
  %v290 = vpop.f32.mrf.mxu0
  %v291 = vadd.f32 %v232, %v290
  %292 = vdwg.mxu0
  %v293 = vand.u32 %v77, 4294901760
  %294 = vmatpush.msra.mxu0 %v293
  %v295 = vand.u32 %v76, 4294901760
  %296 = vmatpush.msra.mxu0 %v295
  %v297 = vand.u32 %v75, 4294901760
  %298 = vmatpush.msra.mxu0 %v297
  %v299 = vand.u32 %v74, 4294901760
  %300 = vmatpush.msra.mxu0 %v299
  %v301 = vand.u32 %v73, 4294901760
  %302 = vmatpush.msra.mxu0 %v301
  %v303 = vand.u32 %v72, 4294901760
  %304 = vmatpush.msra.mxu0 %v303
  %v305 = vand.u32 %v71, 4294901760
  %306 = vmatpush.msra.mxu0 %v305
  %v307 = vand.u32 %v70, 4294901760
  %308 = vmatpush.msra.mxu0 %v307
  %v309 = vand.u32 %v69, 4294901760
  %310 = vmatpush.msra.mxu0 %v309
  %v311 = vand.u32 %v68, 4294901760
  %312 = vmatpush.msra.mxu0 %v311
  %v313 = vand.u32 %v67, 4294901760
  %314 = vmatpush.msra.mxu0 %v313
  %v315 = vand.u32 %v66, 4294901760
  %316 = vmatpush.msra.mxu0 %v315
  %v317 = vand.u32 %v65, 4294901760
  %318 = vmatpush.msra.mxu0 %v317
  %v319 = vand.u32 %v64, 4294901760
  %320 = vmatpush.msra.mxu0 %v319
  %v321 = vand.u32 %v63, 4294901760
  %322 = vmatpush.msra.mxu0 %v321
  %v323 = vand.u32 %v62, 4294901760
  %324 = vmatpush.msra.mxu0 %v323
  %v325 = vand.u32 %v78, 4294901760
  %v326 = vsub.f32 %v78, %v325
  %v327 = vand.u32 %v326, 4294901760
  %328 = vmatmul.f32.gmra.mxu0 %v327
  %v329 = vpop.f32.mrf.mxu0
  %v330 = vadd.f32 %v286, %v329
  %v331 = vand.u32 %v79, 4294901760
  %v332 = vsub.f32 %v79, %v331
  %v333 = vand.u32 %v332, 4294901760
  %334 = vmatmul.f32.gmra.mxu0 %v333
  %v335 = vpop.f32.mrf.mxu0
  %v336 = vadd.f32 %v291, %v335
  %337 = vdwg.mxu0
  %v338 = vand.u32 %v77, 4294901760
  %v339 = vsub.f32 %v77, %v338
  %v340 = vand.u32 %v339, 4294901760
  %341 = vmatpush.msra.mxu0 %v340
  %v342 = vand.u32 %v76, 4294901760
  %v343 = vsub.f32 %v76, %v342
  %v344 = vand.u32 %v343, 4294901760
  %345 = vmatpush.msra.mxu0 %v344
  %v346 = vand.u32 %v75, 4294901760
  %v347 = vsub.f32 %v75, %v346
  %v348 = vand.u32 %v347, 4294901760
  %349 = vmatpush.msra.mxu0 %v348
  %v350 = vand.u32 %v74, 4294901760
  %v351 = vsub.f32 %v74, %v350
  %v352 = vand.u32 %v351, 4294901760
  %353 = vmatpush.msra.mxu0 %v352
  %v354 = vand.u32 %v73, 4294901760
  %v355 = vsub.f32 %v73, %v354
  %v356 = vand.u32 %v355, 4294901760
  %357 = vmatpush.msra.mxu0 %v356
  %v358 = vand.u32 %v72, 4294901760
  %v359 = vsub.f32 %v72, %v358
  %v360 = vand.u32 %v359, 4294901760
  %361 = vmatpush.msra.mxu0 %v360
  %v362 = vand.u32 %v71, 4294901760
  %v363 = vsub.f32 %v71, %v362
  %v364 = vand.u32 %v363, 4294901760
  %365 = vmatpush.msra.mxu0 %v364
  %v366 = vand.u32 %v70, 4294901760
  %v367 = vsub.f32 %v70, %v366
  %v368 = vand.u32 %v367, 4294901760
  %369 = vmatpush.msra.mxu0 %v368
  %v370 = vand.u32 %v69, 4294901760
  %v371 = vsub.f32 %v69, %v370
  %v372 = vand.u32 %v371, 4294901760
  %373 = vmatpush.msra.mxu0 %v372
  %v374 = vand.u32 %v68, 4294901760
  %v375 = vsub.f32 %v68, %v374
  %v376 = vand.u32 %v375, 4294901760
  %377 = vmatpush.msra.mxu0 %v376
  %v378 = vand.u32 %v67, 4294901760
  %v379 = vsub.f32 %v67, %v378
  %v380 = vand.u32 %v379, 4294901760
  %381 = vmatpush.msra.mxu0 %v380
  %v382 = vand.u32 %v66, 4294901760
  %v383 = vsub.f32 %v66, %v382
  %v384 = vand.u32 %v383, 4294901760
  %385 = vmatpush.msra.mxu0 %v384
  %v386 = vand.u32 %v65, 4294901760
  %v387 = vsub.f32 %v65, %v386
  %v388 = vand.u32 %v387, 4294901760
  %389 = vmatpush.msra.mxu0 %v388
  %v390 = vand.u32 %v64, 4294901760
  %v391 = vsub.f32 %v64, %v390
  %v392 = vand.u32 %v391, 4294901760
  %393 = vmatpush.msra.mxu0 %v392
  %v394 = vand.u32 %v63, 4294901760
  %v395 = vsub.f32 %v63, %v394
  %v396 = vand.u32 %v395, 4294901760
  %397 = vmatpush.msra.mxu0 %v396
  %v398 = vand.u32 %v62, 4294901760
  %v399 = vsub.f32 %v62, %v398
  %v400 = vand.u32 %v399, 4294901760
  %401 = vmatpush.msra.mxu0 %v400
  %v402 = vand.u32 %v78, 4294901760
  %403 = vmatmul.f32.gmra.mxu0 %v402
  %v404 = vpop.f32.mrf.mxu0
  %v405 = vadd.f32 %v330, %v404
  %v406 = vand.u32 %v79, 4294901760
  %407 = vmatmul.f32.gmra.mxu0 %v406
  %v408 = vpop.f32.mrf.mxu0
  %v409 = vadd.f32 %v336, %v408
  %410 = vdwg.mxu0
  %v411 = vand.u32 %v77, 4294901760
  %412 = vmatpush.msra.mxu0 %v411
  %v413 = vand.u32 %v76, 4294901760
  %414 = vmatpush.msra.mxu0 %v413
  %v415 = vand.u32 %v75, 4294901760
  %416 = vmatpush.msra.mxu0 %v415
  %v417 = vand.u32 %v74, 4294901760
  %418 = vmatpush.msra.mxu0 %v417
  %v419 = vand.u32 %v73, 4294901760
  %420 = vmatpush.msra.mxu0 %v419
  %v421 = vand.u32 %v72, 4294901760
  %422 = vmatpush.msra.mxu0 %v421
  %v423 = vand.u32 %v71, 4294901760
  %424 = vmatpush.msra.mxu0 %v423
  %v425 = vand.u32 %v70, 4294901760
  %426 = vmatpush.msra.mxu0 %v425
  %v427 = vand.u32 %v69, 4294901760
  %428 = vmatpush.msra.mxu0 %v427
  %v429 = vand.u32 %v68, 4294901760
  %430 = vmatpush.msra.mxu0 %v429
  %v431 = vand.u32 %v67, 4294901760
  %432 = vmatpush.msra.mxu0 %v431
  %v433 = vand.u32 %v66, 4294901760
  %434 = vmatpush.msra.mxu0 %v433
  %v435 = vand.u32 %v65, 4294901760
  %436 = vmatpush.msra.mxu0 %v435
  %v437 = vand.u32 %v64, 4294901760
  %438 = vmatpush.msra.mxu0 %v437
  %v439 = vand.u32 %v63, 4294901760
  %440 = vmatpush.msra.mxu0 %v439
  %v441 = vand.u32 %v62, 4294901760
  %442 = vmatpush.msra.mxu0 %v441
  %v443 = vand.u32 %v78, 4294901760
  %444 = vmatmul.f32.gmra.mxu0 %v443
  %v445 = vpop.f32.mrf.mxu0
  %v446 = vadd.f32 %v405, %v445
  %v447 = vand.u32 %v79, 4294901760
  %448 = vmatmul.f32.gmra.mxu0 %v447
  %v449 = vpop.f32.mrf.mxu0
  %v450 = vadd.f32 %v409, %v449
  %451 = vdwg.mxu0
  %452 = vst [vmem:[%s2] sm:$0xff] %v446
  %453 = vst [vmem:[%s2 + $0x8] sm:$0xff] %v450
  // Predicated region
  $region10: #{dummy_model_forward.1} parent=0 // pred_check
    _
  $region11: #{dummy_model_forward.1} parent=0 // pred_check_branch
    %455 = sbr.rel (0) target = $region13
  $region12: #{dummy_model_forward.1} parent=0 // pred_region
    _
  $region13: #{dummy_model_forward.1} parent=0 // pred_fallthru
    _
  // Predicated region
  $region14: #{dummy_model_forward.1} parent=0 // pred_check
    _
  $region15: #{dummy_model_forward.1} parent=0 // pred_check_branch
    %457 = sbr.rel (0) target = $region17
  $region16: #{dummy_model_forward.1} parent=0 // pred_region
    _
  $region17: #{dummy_model_forward.1} parent=0 // pred_fallthru
    _

</llo_original>
